<compile_context>
chip_gen: v7x
topology: tpu7x:2x2x1
jax: 0.10.0
libtpu: 0.0.40
codegen_flags: <defaults>
</compile_context>

<pallas_src>
import functools

import jax
import jax.numpy as jnp
from jax.experimental import pallas as pl
from jax.experimental.pallas import tpu as pltpu


def _mixed_loss_kernel(*refs, label_smoothing, vocab_size, ignore_index,
                       use_mxu, exp_in_bf16):
    if use_mxu:
        x_ref, t_ref, ones_ref, out_ref = refs
    else:
        x_ref, t_ref, out_ref = refs

    xb = x_ref[...]            # (TN, V) logits tile, native dtype
    t = t_ref[...]             # (TN, 1) int32 targets
    tn, v = xb.shape

    a = 1.0 - label_smoothing
    u = label_smoothing / float(vocab_size)

    lane = jax.lax.broadcasted_iota(jnp.int32, (tn, v), 1)
    tmask = lane == t          # (TN, V) — one compare, reused below

    if use_mxu:
        # Lane-axis reductions on the MXU (dot against an all-ones RHS,
        # accumulated in f32).  At bf16 HBM rates (>=700 Gelem/s on v6e,
        # ~1.6 Telem/s per TC on v7x) the VPU cannot afford ~10 ops/elem, so
        # only cmp/select/mul/max/sub stay on the VPU here.
        xb16 = xb.astype(jnp.bfloat16)          # no-op for bf16 inputs
        ones_rhs = ones_ref[...]                # (V, 128) bf16, resident once
        dnums = (((1,), (0,)), ((), ()))

        def lane_sum(y):                        # (TN, V) -> (TN, 1) f32
            return jax.lax.dot_general(
                y, ones_rhs, dnums,
                preferred_element_type=jnp.float32)[:, 0:1]

        zero = jnp.zeros((), dtype=xb16.dtype)
        x_t = lane_sum(jnp.where(tmask, xb16, zero))     # x[row, target[row]]
        sum_x = lane_sum(xb16)
        sum_x2 = lane_sum(xb16 * xb16)
        m16 = jnp.max(xb16, axis=-1, keepdims=True)
        diff = xb16 - m16
        if exp_in_bf16:
            # v6e/v7x: native bf16 EUP exp at ~2x the f32 rate (review item).
            e = jnp.exp(diff)
        else:
            # Default: exp at f32 accuracy, cast only for the MXU reduction.
            e = jnp.exp(diff.astype(jnp.float32)).astype(jnp.bfloat16)
        exp_sum = lane_sum(e)
        m = m16.astype(jnp.float32)
    else:
        # f32 inputs: plain VPU reductions preserve exact f32 accuracy and the
        # VPU already sits at the f32 HBM roofline (~350 Gelem/s on v6e).
        x = xb.astype(jnp.float32)
        x_t = jnp.sum(jnp.where(tmask, x, 0.0), axis=-1, keepdims=True)
        sum_x = jnp.sum(x, axis=-1, keepdims=True)
        sum_x2 = jnp.sum(x * x, axis=-1, keepdims=True)
        m = jnp.max(x, axis=-1, keepdims=True)
        exp_sum = jnp.sum(jnp.exp(x - m), axis=-1, keepdims=True)

    lse = m + jnp.log(exp_sum)                           # (TN, 1)

    # CE per row: -sum_j q'_j (x_j - lse)
    #   = -( (1-ls)*(x_t - lse) + (ls/V)*(sum_x - V*lse) )
    ce_row = -(a * (x_t - lse) + u * (sum_x - float(vocab_size) * lse))

    # MSE per row: sum_j (x_j - q'_j)^2
    #   = sum_x2 - 2*((1-ls)*x_t + (ls/V)*sum_x) + ||q'||^2
    qnorm = (a + u) ** 2 + (vocab_size - 1) * u * u
    mse_row = sum_x2 - 2.0 * (a * x_t + u * sum_x) + qnorm

    # Ignored rows contribute nothing (matches the reference masked_fill).
    # where() rather than multiply so non-finite values in masked rows cannot
    # poison the tile sums via 0*inf.
    valid = t != ignore_index
    ce_s = jnp.sum(jnp.where(valid, ce_row, 0.0))
    mse_s = jnp.sum(jnp.where(valid, mse_row, 0.0))
    cnt_s = jnp.sum(valid.astype(jnp.float32))

    # Per-tile partials in a lane-dense (8,128) slab: lanes 0/1/2 carry
    # ce / mse / valid-count (host reads row 0).
    out_lane = jax.lax.broadcasted_iota(jnp.int32, (8, 128), 1)
    slab = jnp.where(out_lane == 0, ce_s,
                     jnp.where(out_lane == 1, mse_s,
                               jnp.where(out_lane == 2, cnt_s, 0.0)))
    out_ref[0] = slab.astype(jnp.float32)


def _device_vmem_bytes():
    try:
        return int(pltpu.get_tpu_info().vmem_capacity_bytes)
    except Exception:
        # Conservative fallback: v7x has only 64 MiB of VMEM per TensorCore.
        return 64 * 1024 * 1024


def _target_block_rows(n, v, in_itemsize, vmem_limit_bytes, use_mxu):
    """Largest row tile that honestly fits the scoped-VMEM budget."""
    # Fixed (not per-row): the (V,128) bf16 all-ones MXU operand; the pipeline
    # may keep two buffers for it even though its block index never changes.
    fixed = (2 * v * 128 * 2) if use_mxu else 0
    # Per row: double-buffered native-dtype logits tile, the lane-padded
    # (x128) int32 targets tile (double-buffered), and ~3 live V-wide
    # temporaries in the compute dtype (masked x / x^2 / exp in bf16, or the
    # f32 x plus transients).
    tmp_item = 2 if use_mxu else 4
    per_row = 2 * v * in_itemsize + 2 * 128 * 4 + 3 * v * tmp_item
    budget = vmem_limit_bytes // 2 - fixed
    target = max(8, budget // per_row)
    target = min(target, 1024)          # diminishing returns beyond ~512-1024
    # v7x: the "parallel" axis is split across 2 TensorCores; prefer >=4 tiles
    # whenever there is enough work so neither core idles.
    if n // 4 >= 8:
        target = min(target, n // 4)
    return int(target)


def _choose_tiling(n, target_rows):
    """Pick block_rows while avoiding any full-array padding of the logits.

    Preference: (1) a multiple-of-8 exact divisor of n (no padding, no ragged
    tiles), (2) a single full tile when n is awkward but fits, (3) the old pad
    path as a last resort (full HBM copy — see review note)."""
    target = max(8, min(int(target_rows), n))
    start = (target // 8) * 8
    for d in range(start, 7, -8):
        if n % d == 0:
            return d, False
    if n <= int(target_rows):
        return n, False                 # one full tile (block == array dims)
    return max(8, start), True          # last resort: pad


def mixed_loss(logits, targets, *, label_smoothing, vocab_size,
               ignore_index=-100, reduction='mean', is_logits=True,
               mse_weight=0.5, ce_weight=0.5,
               block_rows=None, mxu_reductions=None, exp_in_bf16=False):
    assert 0.0 <= label_smoothing <= 1.0
    assert reduction in ('mean', 'sum')
    del is_logits  # kept for signature parity with the PyTorch module
    b, s, v = logits.shape
    assert v == vocab_size
    n = b * s

    x = logits.reshape(n, v)                       # native dtype, no upcast
    t = targets.reshape(n, 1).astype(jnp.int32)

    in_itemsize = jnp.dtype(x.dtype).itemsize
    if mxu_reductions is None:
        # Sub-32-bit inputs stream >=2x the elements/s from HBM and would be
        # VALU-bound with VPU reductions; offload lane reductions to the MXU.
        mxu_reductions = in_itemsize < 4
    use_mxu = bool(mxu_reductions)

    vmem_cap = _device_vmem_bytes()
    vmem_limit = int(vmem_cap * 3 // 4)

    target_rows = (_target_block_rows(n, v, in_itemsize, vmem_limit, use_mxu)
                   if block_rows is None else int(block_rows))
    br, needs_pad = _choose_tiling(n, target_rows)

    if needs_pad:
        # Rare fallback (awkward n that does not fit a single tile): pad with
        # ignore_index rows.  This copies the logits once in HBM — avoided in
        # all common cases by the divisor-based tiling above.
        n_pad = pl.cdiv(n, br) * br
        x = jnp.pad(x, ((0, n_pad - n), (0, 0)))
        t = jnp.pad(t, ((0, n_pad - n), (0, 0)), constant_values=ignore_index)
        n_rows = n_pad
    else:
        n_rows = n
    num_tiles = n_rows // br

    kernel = functools.partial(
        _mixed_loss_kernel,
        label_smoothing=float(label_smoothing),
        vocab_size=int(vocab_size),
        ignore_index=int(ignore_index),
        use_mxu=use_mxu,
        exp_in_bf16=bool(exp_in_bf16),
    )

    args = [x, t]
    in_specs = [
        pl.BlockSpec((br, v), lambda i: (i, 0)),
        pl.BlockSpec((br, 1), lambda i: (i, 0)),
    ]
    if use_mxu:
        # Shared all-ones RHS for the MXU lane reductions; constant block
        # index so the pipeline fetches it once and keeps it resident.
        args.append(jnp.ones((v, 128), dtype=jnp.bfloat16))
        in_specs.append(pl.BlockSpec((v, 128), lambda i: (0, 0)))

    partials = pl.pallas_call(
        kernel,
        out_shape=jax.ShapeDtypeStruct((num_tiles, 8, 128), jnp.float32),
        grid_spec=pltpu.PrefetchScalarGridSpec(
            num_scalar_prefetch=0,
            grid=(num_tiles,),
            in_specs=in_specs,
            out_specs=pl.BlockSpec((1, 8, 128), lambda i: (i, 0, 0)),
        ),
        compiler_params=pltpu.CompilerParams(
            dimension_semantics=("parallel",),
            vmem_limit_bytes=vmem_limit,
        ),
    )(*args)

    ce_s = jnp.sum(partials[:, 0, 0])
    mse_s = jnp.sum(partials[:, 0, 1])
    cnt = jnp.sum(partials[:, 0, 2])
    if reduction == 'mean':
        # NOTE: like the PyTorch reference, an all-ignored batch yields inf/nan.
        inv = 1.0 / cnt
        ce_s = ce_s * inv
        mse_s = mse_s * inv
    return mse_weight * mse_s + ce_weight * ce_s


def mixed_loss_ref(logits, targets, *, label_smoothing, vocab_size,
                   ignore_index=-100, reduction='mean',
                   mse_weight=0.5, ce_weight=0.5):
    """Pure-JAX reference mirroring the PyTorch forward."""
    x = logits.astype(jnp.float32)
    mask = (targets == ignore_index)[..., None]
    onehot = jax.nn.one_hot(jnp.clip(targets, 0, vocab_size - 1), vocab_size,
                            dtype=jnp.float32)
    onehot = jnp.where(targets[..., None] < 0, 0.0, onehot)
    u = 1.0 / vocab_size
    qp = (1.0 - label_smoothing) * onehot + label_smoothing * u
    qp = jnp.where(mask, 0.0, qp)
    lse = jax.scipy.special.logsumexp(x, axis=-1, keepdims=True)
    ce = -jnp.sum(qp * (x - lse), axis=-1)
    mse = jnp.sum((x - qp) ** 2, axis=-1)
    mse = jnp.where(mask[..., 0], 0.0, mse)
    if reduction == 'mean':
        lengths = jnp.sum(targets != ignore_index).astype(jnp.float32)
        ce = ce.sum() / lengths
        mse = mse.sum() / lengths
    else:
        ce = ce.sum()
        mse = mse.sum()
    return mse_weight * mse + ce_weight * ce


if __name__ == "__main__":
    key = jax.random.PRNGKey(0)
    k1, k2, k3 = jax.random.split(key, 3)

    V = 32
    IGNORE = -100

    def run_case(name, logits, targets, *, reduction, block_rows,
                 rtol, atol, mxu=None):
        out = mixed_loss(logits, targets, label_smoothing=0.1, vocab_size=V,
                         ignore_index=IGNORE, reduction=reduction,
                         mse_weight=0.5, ce_weight=0.5,
                         block_rows=block_rows, mxu_reductions=mxu)
        out = jax.block_until_ready(out)
        ref = mixed_loss_ref(logits, targets, label_smoothing=0.1,
                             vocab_size=V, ignore_index=IGNORE,
                             reduction=reduction,
                             mse_weight=0.5, ce_weight=0.5)
        assert jnp.allclose(out, ref, rtol=rtol, atol=atol), (name, out, ref)

    # n = B*S = 16 (multiple of 8): exact-divisor tiling, no padding.
    B, S = 2, 8
    logits = jax.random.normal(k1, (B, S, V), dtype=jnp.float32)
    targets = jax.random.randint(k2, (B, S), 0, V, dtype=jnp.int32)
    drop = jax.random.bernoulli(k3, 0.25, (B, S))
    targets = jnp.where(drop, IGNORE, targets)

    # f32 path (VPU reductions, exact vs the f32 reference).
    run_case("f32_mean_auto", logits, targets, reduction='mean',
             block_rows=None, rtol=1e-5, atol=1e-4)
    run_case("f32_sum_auto", logits, targets, reduction='sum',
             block_rows=None, rtol=1e-5, atol=1e-4)
    run_case("f32_mean_2tiles", logits, targets, reduction='mean',
             block_rows=8, rtol=1e-5, atol=1e-4)

    # bf16 path (MXU lane reductions; bf16-level tolerance vs f32 reference).
    logits_bf16 = logits.astype(jnp.bfloat16)
    run_case("bf16_mean_2tiles", logits_bf16, targets, reduction='mean',
             block_rows=8, rtol=1e-2, atol=1e-2)
    run_case("bf16_sum_auto", logits_bf16, targets, reduction='sum',
             block_rows=None, rtol=1e-2, atol=1e-2)

    # n = 18 (not a multiple of 8): single full tile, still no padding.
    B2, S2 = 2, 9
    l2 = jax.random.normal(k1, (B2, S2, V), dtype=jnp.float32)
    t2 = jax.random.randint(k2, (B2, S2), 0, V, dtype=jnp.int32)
    run_case("f32_mean_awkward_n", l2, t2, reduction='mean',
             block_rows=None, rtol=1e-5, atol=1e-4)

    print("KERNEL_OK")
</pallas_src>

<mosaic_0001>
module attributes {stable_mosaic.version = 11 : i64} {
  func.func @_mixed_loss_kernel(%arg0: i32, %arg1: memref<16x32xf32, #tpu.memory_space<vmem>>, %arg2: memref<16x1xi32, #tpu.memory_space<vmem>>, %arg3: memref<1x8x128xf32, #tpu.memory_space<vmem>>) attributes {dimension_semantics = [#tpu.dimension_semantics<parallel>], iteration_bounds = array<i64: 1>, scalar_prefetch = 0 : i64, scratch_operands = 0 : i64, tpu.core_type = #tpu.core_type<tc>, window_params = [{transform_indices = @transform_0, window_bounds = array<i64: 16, 32>}, {transform_indices = @transform_1, window_bounds = array<i64: 16, 1>}, {transform_indices = @transform_2, window_bounds = array<i64: 1, 8, 128>}]} {
    %c0 = arith.constant 0 : index
    %c0_0 = arith.constant 0 : index
    %0 = vector.load %arg1[%c0, %c0_0] : memref<16x32xf32, #tpu.memory_space<vmem>>, vector<16x32xf32>
    %c0_1 = arith.constant 0 : index
    %c0_2 = arith.constant 0 : index
    %1 = vector.load %arg2[%c0_1, %c0_2] : memref<16x1xi32, #tpu.memory_space<vmem>>, vector<16x1xi32>
    %2 = tpu.iota {dimensions = array<i32: 1>} : vector<16x32xi32>
    %3 = vector.broadcast %1 : vector<16x1xi32> to vector<16x32xi32>
    %4 = arith.cmpi eq, %2, %3 : vector<16x32xi32>
    %cst = arith.constant 0.000000e+00 : f32
    %5 = vector.broadcast %cst : f32 to vector<16x32xf32>
    %6 = arith.select %4, %0, %5 : vector<16x32xi1>, vector<16x32xf32>
    %cst_3 = arith.constant dense<0.000000e+00> : vector<16xf32>
    %7 = vector.multi_reduction <add>, %6, %cst_3 [1] : vector<16x32xf32> to vector<16xf32>
    %8 = vector.shape_cast %7 : vector<16xf32> to vector<16x1xf32>
    %cst_4 = arith.constant dense<0.000000e+00> : vector<16xf32>
    %9 = vector.multi_reduction <add>, %0, %cst_4 [1] : vector<16x32xf32> to vector<16xf32>
    %10 = vector.shape_cast %9 : vector<16xf32> to vector<16x1xf32>
    %11 = arith.mulf %0, %0 : vector<16x32xf32>
    %cst_5 = arith.constant dense<0.000000e+00> : vector<16xf32>
    %12 = vector.multi_reduction <add>, %11, %cst_5 [1] : vector<16x32xf32> to vector<16xf32>
    %13 = vector.shape_cast %12 : vector<16xf32> to vector<16x1xf32>
    %cst_6 = arith.constant dense<0xFF800000> : vector<16xf32>
    %14 = vector.multi_reduction <maximumf>, %0, %cst_6 [1] : vector<16x32xf32> to vector<16xf32>
    %15 = vector.shape_cast %14 : vector<16xf32> to vector<16x1xf32>
    %16 = vector.broadcast %15 : vector<16x1xf32> to vector<16x32xf32>
    %17 = arith.subf %0, %16 : vector<16x32xf32>
    %18 = math.exp %17 : vector<16x32xf32>
    %cst_7 = arith.constant dense<0.000000e+00> : vector<16xf32>
    %19 = vector.multi_reduction <add>, %18, %cst_7 [1] : vector<16x32xf32> to vector<16xf32>
    %20 = vector.shape_cast %19 : vector<16xf32> to vector<16x1xf32>
    %21 = math.log %20 : vector<16x1xf32>
    %22 = arith.addf %15, %21 : vector<16x1xf32>
    %23 = arith.subf %8, %22 : vector<16x1xf32>
    %cst_8 = arith.constant 0.899999976 : f32
    %24 = vector.broadcast %cst_8 : f32 to vector<16x1xf32>
    %25 = arith.mulf %24, %23 : vector<16x1xf32>
    %cst_9 = arith.constant 3.200000e+01 : f32
    %26 = vector.broadcast %cst_9 : f32 to vector<16x1xf32>
    %27 = arith.mulf %26, %22 : vector<16x1xf32>
    %28 = arith.subf %10, %27 : vector<16x1xf32>
    %cst_10 = arith.constant 3.125000e-03 : f32
    %29 = vector.broadcast %cst_10 : f32 to vector<16x1xf32>
    %30 = arith.mulf %29, %28 : vector<16x1xf32>
    %31 = arith.addf %25, %30 : vector<16x1xf32>
    %cst_11 = arith.constant 0.000000e+00 : f32
    %32 = vector.broadcast %cst_11 : f32 to vector<16x1xf32>
    %33 = arith.subf %32, %31 : vector<16x1xf32>
    %cst_12 = arith.constant 0.899999976 : f32
    %34 = vector.broadcast %cst_12 : f32 to vector<16x1xf32>
    %35 = arith.mulf %34, %8 : vector<16x1xf32>
    %cst_13 = arith.constant 3.125000e-03 : f32
    %36 = vector.broadcast %cst_13 : f32 to vector<16x1xf32>
    %37 = arith.mulf %36, %10 : vector<16x1xf32>
    %38 = arith.addf %35, %37 : vector<16x1xf32>
    %cst_14 = arith.constant 2.000000e+00 : f32
    %39 = vector.broadcast %cst_14 : f32 to vector<16x1xf32>
    %40 = arith.mulf %39, %38 : vector<16x1xf32>
    %41 = arith.subf %13, %40 : vector<16x1xf32>
    %cst_15 = arith.constant 0.815937519 : f32
    %42 = vector.broadcast %cst_15 : f32 to vector<16x1xf32>
    %43 = arith.addf %41, %42 : vector<16x1xf32>
    %c-100_i32 = arith.constant -100 : i32
    %44 = vector.broadcast %c-100_i32 : i32 to vector<16x1xi32>
    %45 = arith.cmpi ne, %1, %44 : vector<16x1xi32>
    %cst_16 = arith.constant 0.000000e+00 : f32
    %46 = vector.broadcast %cst_16 : f32 to vector<16x1xf32>
    %47 = arith.select %45, %33, %46 : vector<16x1xi1>, vector<16x1xf32>
    %48 = vector.shape_cast %47 : vector<16x1xf32> to vector<1x16x1xf32>
    %cst_17 = arith.constant dense<0.000000e+00> : vector<1xf32>
    %49 = vector.multi_reduction <add>, %48, %cst_17 [1, 2] : vector<1x16x1xf32> to vector<1xf32>
    %50 = vector.shape_cast %49 : vector<1xf32> to vector<1x1x1xf32>
    %51 = vector.extract %50[0, 0, 0] : f32 from vector<1x1x1xf32>
    %cst_18 = arith.constant 0.000000e+00 : f32
    %52 = vector.broadcast %cst_18 : f32 to vector<16x1xf32>
    %53 = arith.select %45, %43, %52 : vector<16x1xi1>, vector<16x1xf32>
    %54 = vector.shape_cast %53 : vector<16x1xf32> to vector<1x16x1xf32>
    %cst_19 = arith.constant dense<0.000000e+00> : vector<1xf32>
    %55 = vector.multi_reduction <add>, %54, %cst_19 [1, 2] : vector<1x16x1xf32> to vector<1xf32>
    %56 = vector.shape_cast %55 : vector<1xf32> to vector<1x1x1xf32>
    %57 = vector.extract %56[0, 0, 0] : f32 from vector<1x1x1xf32>
    %58 = arith.extui %45 : vector<16x1xi1> to vector<16x1xi32>
    %59 = arith.sitofp %58 : vector<16x1xi32> to vector<16x1xf32>
    %60 = vector.shape_cast %59 : vector<16x1xf32> to vector<1x16x1xf32>
    %cst_20 = arith.constant dense<0.000000e+00> : vector<1xf32>
    %61 = vector.multi_reduction <add>, %60, %cst_20 [1, 2] : vector<1x16x1xf32> to vector<1xf32>
    %62 = vector.shape_cast %61 : vector<1xf32> to vector<1x1x1xf32>
    %63 = vector.extract %62[0, 0, 0] : f32 from vector<1x1x1xf32>
    %64 = tpu.iota {dimensions = array<i32: 1>} : vector<8x128xi32>
    %c0_i32 = arith.constant 0 : i32
    %65 = vector.broadcast %c0_i32 : i32 to vector<8x128xi32>
    %66 = arith.cmpi eq, %64, %65 : vector<8x128xi32>
    %c1_i32 = arith.constant 1 : i32
    %67 = vector.broadcast %c1_i32 : i32 to vector<8x128xi32>
    %68 = arith.cmpi eq, %64, %67 : vector<8x128xi32>
    %c2_i32 = arith.constant 2 : i32
    %69 = vector.broadcast %c2_i32 : i32 to vector<8x128xi32>
    %70 = arith.cmpi eq, %64, %69 : vector<8x128xi32>
    %cst_21 = arith.constant 0.000000e+00 : f32
    %71 = vector.broadcast %63 : f32 to vector<8x128xf32>
    %72 = vector.broadcast %cst_21 : f32 to vector<8x128xf32>
    %73 = arith.select %70, %71, %72 : vector<8x128xi1>, vector<8x128xf32>
    %74 = vector.broadcast %57 : f32 to vector<8x128xf32>
    %75 = arith.select %68, %74, %73 : vector<8x128xi1>, vector<8x128xf32>
    %76 = vector.broadcast %51 : f32 to vector<8x128xf32>
    %77 = arith.select %66, %76, %75 : vector<8x128xi1>, vector<8x128xf32>
    %c0_22 = arith.constant 0 : index
    %c0_23 = arith.constant 0 : index
    %c0_24 = arith.constant 0 : index
    %78 = vector.load %arg3[%c0_22, %c0_23, %c0_24] : memref<1x8x128xf32, #tpu.memory_space<vmem>>, vector<1x8x128xf32>
    %79 = vector.shape_cast %78 : vector<1x8x128xf32> to vector<8x128xf32>
    %80 = vector.shape_cast %77 : vector<8x128xf32> to vector<1x8x128xf32>
    tpu.vector_store %arg3[%c0_22, %c0_23, %c0_24], %80 {strides = array<i32>} : memref<1x8x128xf32, #tpu.memory_space<vmem>>, vector<1x8x128xf32>,
    return
  }
  func.func @transform_0(%arg0: i32) -> (i32, i32) {
    %c0_i32 = arith.constant 0 : i32
    %c0_i32_0 = arith.constant 0 : i32
    return %arg0, %c0_i32 : i32, i32
  }
  func.func @transform_1(%arg0: i32) -> (i32, i32) {
    %c0_i32 = arith.constant 0 : i32
    %c0_i32_0 = arith.constant 0 : i32
    return %arg0, %c0_i32 : i32, i32
  }
  func.func @transform_2(%arg0: i32) -> (i32, i32, i32) {
    %c0_i32 = arith.constant 0 : i32
    %c0_i32_0 = arith.constant 0 : i32
    %c0_i32_1 = arith.constant 0 : i32
    return %arg0, %c0_i32, %c0_i32_0 : i32, i32, i32
  }
}

</mosaic_0001>

<llo_original>
// kernel: tpu_custom_call.1
$region0: #{tpu_custom_call.1}
  #allocation0 [shape = 'u32[]', space=smem, size = 0x4, offset = 0x4, fixed_abs, tag = 'smem constant byte address 0x4 - core index']
  #allocation1 [shape = 'u32[144,128]{1,0:T(1,128)}', space=vmem, size = 0x12000, scoped, tag = 'internal scratch']
  %s0 = inlined_call_operand.vmem [shape: f32[16,32], index: 0, kind: input, shape index: {}]
  %s1 = inlined_call_operand.vmem [shape: s32[16,1], index: 1, kind: input, shape index: {}]
  %s2 = inlined_call_operand.hbm [shape: f32[1,8,128], index: 2, kind: output, shape index: {}]
  %s3 = sld [smem:[#allocation0]]
  $region18: #{tpu_custom_call.1} parent=0
    _
  %s5 = ssub.s32 1, %s3
  %s6 = scalar_select 0, %s5, %s3
  $region1: #{tpu_custom_call.1} parent=0
    #allocation2 [shape = 'u8[4096]{0}', space=vmem, size = 0x1000, scoped, tag = 'output window, operand 0, single buffered']
    #allocation3 [shape = 's32[1]{0}', space=sflag, size = 0x4, scoped, tag = 'scoped memory for tpu_custom_call.1']
    %7 = vsyncpa [#allocation3], 0
    // Predicated region
    $region2: #{tpu_custom_call.1} parent=1 // pred_check
      _
    $region3: #{tpu_custom_call.1} parent=1 // pred_check_branch
      %9 = sbr.rel (0) target = $region5
    $region4: #{tpu_custom_call.1} parent=1 // pred_region
      _
    $region5: #{tpu_custom_call.1} parent=1 // pred_fallthru
      _
    // Predicated region
    $region6: #{tpu_custom_call.1} parent=1 // pred_check
      _
    $region7: #{tpu_custom_call.1} parent=1 // pred_check_branch
      %11 = sbr.rel (0) target = $region9
    $region8: #{tpu_custom_call.1} parent=1 // pred_region
      _
    $region9: #{tpu_custom_call.1} parent=1 // pred_fallthru
      _
    %v12 = vld [vmem:[%s0] sm:$0xff]
    %v13 = vld [vmem:[%s0 + $0x8] sm:$0xff]
    %v14 = vld [vmem:[%s1] sm:$0xff]
    %v15 = vld [vmem:[%s1 + $0x8] sm:$0xff]
    %v16 = vlaneseq
    %v17 = vand.u32 %v16, 127
    %18 = vset.pattern.permute.xlu0 0
    %19 = vperm.xlu0 %18, %v14
    %v20 = vpop.permute.xlu0 %19
    %21 = vset.pattern.permute.xlu0 0
    %22 = vperm.xlu0 %21, %v15
    %v23 = vpop.permute.xlu0 %22
    %vm24 = vcmp.eq.s32.totalorder %v17, %v20
    %vm25 = vcmp.eq.s32.totalorder %v17, %v23
    %v26 = vsel %vm24, %v12, 0.0
    %v27 = vsel %vm25, %v13, 0.0
    %vm28 = vcmask 261120
    %v29 = vsel %vm28, %v26, 0.0
    %30 = vadd.xlane.f32.xlu0 %v29
    %v31 = vpop.xlane.xlu0 %30
    %v32 = vsel %vm28, %v27, 0.0
    %33 = vadd.xlane.f32.xlu0 %v32
    %v34 = vpop.xlane.xlu0 %33
    %v35 = vsel %vm28, %v12, 0.0
    %36 = vadd.xlane.f32.xlu0 %v35
    %v37 = vpop.xlane.xlu0 %36
    %v38 = vsel %vm28, %v13, 0.0
    %39 = vadd.xlane.f32.xlu0 %v38
    %v40 = vpop.xlane.xlu0 %39
    %v41 = vmul.f32 %v12, %v12
    %v42 = vmul.f32 %v13, %v13
    %v43 = vsel %vm28, %v41, 0.0
    %44 = vadd.xlane.f32.xlu0 %v43
    %v45 = vpop.xlane.xlu0 %44
    %v46 = vsel %vm28, %v42, 0.0
    %47 = vadd.xlane.f32.xlu0 %v46
    %v48 = vpop.xlane.xlu0 %47
    %v49 = vsel %vm28, %v12, -inf
    %50 = vmax.xlane.f32.xlu0 %v49
    %v51 = vpop.xlane.xlu0 %50
    %v52 = vsel %vm28, %v13, -inf
    %53 = vmax.xlane.f32.xlu0 %v52
    %v54 = vpop.xlane.xlu0 %53
    %v55 = vsub.f32 %v12, %v51
    %v56 = vsub.f32 %v13, %v54
    %v57 = vmul.f32 %v55, 1.442695
    %v58 = vpow.pop %v57
    %v59 = vmul.f32 %v56, 1.442695
    %v60 = vpow.pop %v59
    %v61 = vsel %vm28, %v58, 0.0
    %62 = vadd.xlane.f32.xlu0 %v61
    %v63 = vpop.xlane.xlu0 %62
    %v64 = vsel %vm28, %v60, 0.0
    %65 = vadd.xlane.f32.xlu0 %v64
    %v66 = vpop.xlane.xlu0 %65
    %v67 = vlog2.pop %v63
    %v68 = vmul.f32 %v67, 0.6931472
    %v69 = vlog2.pop %v66
    %v70 = vmul.f32 %v69, 0.6931472
    %v71 = vadd.f32 %v51, %v68
    %v72 = vadd.f32 %v54, %v70
    %v73 = vsub.f32 %v31, %v71
    %v74 = vsub.f32 %v34, %v72
    %v75 = vmul.f32 %v73, 0.9
    %v76 = vmul.f32 %v74, 0.9
    %v77 = vmul.f32 %v71, 32.0
    %v78 = vmul.f32 %v72, 32.0
    %v79 = vsub.f32 %v37, %v77
    %v80 = vsub.f32 %v40, %v78
    %v81 = vmul.f32 %v79, 0.003125
    %v82 = vmul.f32 %v80, 0.003125
    %v83 = vadd.f32 %v75, %v81
    %v84 = vadd.f32 %v76, %v82
    %v85 = vsub.f32 0.0, %v83
    %v86 = vsub.f32 0.0, %v84
    %v87 = vmul.f32 %v31, 0.9
    %v88 = vmul.f32 %v34, 0.9
    %v89 = vmul.f32 %v37, 0.003125
    %v90 = vmul.f32 %v40, 0.003125
    %v91 = vadd.f32 %v87, %v89
    %v92 = vadd.f32 %v88, %v90
    %v93 = vmul.f32 %v91, 2.0
    %v94 = vmul.f32 %v92, 2.0
    %v95 = vsub.f32 %v45, %v93
    %v96 = vsub.f32 %v48, %v94
    %v97 = vadd.f32 %v95, 0.8159375
    %v98 = vadd.f32 %v96, 0.8159375
    %vm99 = vcmp.ne.s32.totalorder %v14, 4294967196
    %vm100 = vcmp.ne.s32.totalorder %v15, 4294967196
    %v101 = vsel %vm99, %v85, 0.0
    %v102 = vsel %vm100, %v86, 0.0
    %vm103 = vcmask 7168
    %v104 = vsel %vm103, %v101, 0.0
    %v105 = vsel %vm103, %v102, 0.0
    %v106 = vadd.f32 %v104, %v105
    %107 = vadd.xlane.f32.xlu0 %v106
    %v108 = vpop.xlane.xlu0 %107
    %v109 = vrot.slane %v108, 4
    %v110 = vadd.f32 %v108, %v109
    %v111 = vrot.slane %v110, 2
    %v112 = vadd.f32 %v110, %v111
    %v113 = vrot.slane %v112, 1
    %v114 = vadd.f32 %v112, %v113
    %s115 = vtos %v114
    %v116 = vsel %vm99, %v97, 0.0
    %v117 = vsel %vm100, %v98, 0.0
    %v118 = vsel %vm103, %v116, 0.0
    %v119 = vsel %vm103, %v117, 0.0
    %v120 = vadd.f32 %v118, %v119
    %121 = vadd.xlane.f32.xlu0 %v120
    %v122 = vpop.xlane.xlu0 %121
    %v123 = vrot.slane %v122, 4
    %v124 = vadd.f32 %v122, %v123
    %v125 = vrot.slane %v124, 2
    %v126 = vadd.f32 %v124, %v125
    %v127 = vrot.slane %v126, 1
    %v128 = vadd.f32 %v126, %v127
    %s129 = vtos %v128
    %v130 = vsel %vm99, 1, 0
    %v131 = vsel %vm100, 1, 0
    %v132 = vcvt.s32.f32 %v130
    %v133 = vcvt.s32.f32 %v131
    %v134 = vsel %vm103, %v132, 0.0
    %v135 = vsel %vm103, %v133, 0.0
    %v136 = vadd.f32 %v134, %v135
    %137 = vadd.xlane.f32.xlu0 %v136
    %v138 = vpop.xlane.xlu0 %137
    %v139 = vrot.slane %v138, 4
    %v140 = vadd.f32 %v138, %v139
    %v141 = vrot.slane %v140, 2
    %v142 = vadd.f32 %v140, %v141
    %v143 = vrot.slane %v142, 1
    %v144 = vadd.f32 %v142, %v143
    %s145 = vtos %v144
    %vm146 = vcmp.eq.s32.totalorder %v17, 0
    %vm147 = vcmp.eq.s32.totalorder %v17, 1
    %vm148 = vcmp.eq.s32.totalorder %v17, 2
    %v149 = vstv %s145
    %v150 = vsel %vm148, %v149, 0.0
    %v151 = vstv %s129
    %v152 = vsel %vm147, %v151, %v150
    %v153 = vstv %s115
    %v154 = vsel %vm146, %v153, %v152
    %155 = vst [vmem:[#allocation2] sm:$0xff] %v154
    // Predicated region
    $region10: #{tpu_custom_call.1} parent=1 // pred_check
      _
    $region11: #{tpu_custom_call.1} parent=1 // pred_check_branch
      %157 = sbr.rel (0) target = $region13
    $region12: #{tpu_custom_call.1} parent=1 // pred_region
      %s159 = ssub.s32 128, 128
      %160 = vsyncadd [#allocation3], %s159
      %s162 = sshll.u32 [#allocation2], 4
      %s163 = int_to_ptr.vmem [resolvable:$true] %s162
      %165 = dma.vmem_to_hbm [thread:$0]  %s163, 128, %s2, [#allocation3]
    $region13: #{tpu_custom_call.1} parent=1 // pred_fallthru
      _
    // Predicated region
    $region14: #{tpu_custom_call.1} parent=1 // pred_check
      _
    $region15: #{tpu_custom_call.1} parent=1 // pred_check_branch
      %167 = sbr.rel (0) target = $region17
    $region16: #{tpu_custom_call.1} parent=1 // pred_region
      %168 = dma.done [#allocation3], 128
    $region17: #{tpu_custom_call.1} parent=1 // pred_fallthru
      _
    %169 = vsyncpa [#allocation3], 1

</llo_original>
